<compile_context>
chip_gen: v5e
topology: v5e:2x2
jax: 0.10.0
libtpu: 0.0.40
codegen_flags: <defaults>
</compile_context>

<pallas_src>
import math
import functools

import jax
import jax.numpy as jnp
from jax import lax
from jax.experimental import pallas as pl
from jax.experimental.pallas import tpu as pltpu


# ----------------------------------------------------------------------------
# Pallas kernel: block of TF frequencies, 4-real-dot complex matmul + bias
# ----------------------------------------------------------------------------
def _banded_block_kernel(xr_ref, xi_ref, wr_ref, wi_ref, be_ref, out_ref, *,
                         tf, total_f, needs_mask, unroll):
    """One grid step = a block of `tf` frequencies.

    xr_ref, xi_ref : (tf, B, Cin)     real / imag spectrum  (compute dtype)
    wr_ref, wi_ref : (tf, Cin, Cout)  real / imag weights   (compute dtype)
    be_ref         : (F, 1, 2*Cout)   packed [Br | Bi] bias, f32, VMEM-resident
    out_ref        : (tf, B, 2*Cout)  packed [Re | Im] output, f32
    """
    base = pl.program_id(0) * tf

    def compute(f):
        xr = xr_ref[f]
        xi = xi_ref[f]
        wr = wr_ref[f]
        wi = wi_ref[f]
        # Complex matmul as 4 real dots; accumulate in f32 on the MXU.
        yr = (jnp.dot(xr, wr, preferred_element_type=jnp.float32)
              - jnp.dot(xi, wi, preferred_element_type=jnp.float32))
        yi = (jnp.dot(xr, wi, preferred_element_type=jnp.float32)
              + jnp.dot(xi, wr, preferred_element_type=jnp.float32))
        # Packed lane-dense output plane + resident bias (global freq index).
        out_ref[f] = jnp.concatenate([yr, yi], axis=-1) + be_ref[base + f]

    def step(f):
        if needs_mask:
            # Tail mask for the partial last grid block: never compute on (or
            # read bias for) frequencies past the end of the band.
            @pl.when(base + f < total_f)
            def _():
                compute(f)
        else:
            compute(f)

    if tf <= 8:
        for f in range(tf):                 # short block: static unroll
            step(f)
    else:
        def body(f, carry):
            step(f)
            return carry
        lax.fori_loop(0, tf, body, 0, unroll=min(unroll, tf))


# ----------------------------------------------------------------------------
# Sizing helpers
# ----------------------------------------------------------------------------
def _tile_bytes(rows, cols, itemsize):
    """VMEM footprint of one (rows, cols) plane after (sublane, lane) padding."""
    sub = max(32 // itemsize, 8)            # 8 rows f32 / 16 rows bf16 per tile
    r = ((rows + sub - 1) // sub) * sub
    c = ((cols + 127) // 128) * 128
    return r * c * itemsize


def _vmem_sizing(requested_budget=None):
    """Per-generation VMEM budget + matching Mosaic scoped limit."""
    try:
        cap = int(getattr(pltpu.get_tpu_info(), "vmem_capacity_bytes", 64 << 20))
    except Exception:                        # non-TPU tracing fallback
        cap = 64 << 20
    budget = min(int(cap * 0.40), 48 << 20)  # ~48 MiB on v5e/v6e, ~25 MiB on v7x
    if requested_budget is not None:
        budget = max(1 << 20, min(int(requested_budget), int(cap * 0.45)))
    vmem_limit = min(int(cap * 0.90), 2 * budget + (16 << 20))
    vmem_limit = max(vmem_limit, 32 << 20)
    return budget, vmem_limit


def _choose_block_freqs(num_freqs, batch, cin, cout, in_itemsize, vmem_budget_bytes):
    """Frequencies per grid step (leading block dim => no (8,128) constraint)."""
    per_freq = (2 * _tile_bytes(batch, cin, in_itemsize)       # xr, xi blocks
                + 2 * _tile_bytes(cin, cout, in_itemsize)      # wr, wi blocks
                + _tile_bytes(batch, 2 * cout, 4))             # packed f32 output
    resident = num_freqs * _tile_bytes(1, 2 * cout, 4)         # bias, fetched once
    avail = max(vmem_budget_bytes - resident, 2 * per_freq)
    tf = int(avail // (2 * per_freq))                          # 2x: double buffer
    return max(1, min(num_freqs, tf))


# ----------------------------------------------------------------------------
# Band complex matmul: einsum('fbi,fio->fbo', X, W) + B  via pallas_call
# ----------------------------------------------------------------------------
def _band_complex_matmul(xr, xi, wr, wi, be, *, vmem_budget_bytes=None):
    """xr/xi: (F,B,Cin), wr/wi: (F,Cin,Cout), be: (F,1,2Cout) f32 -> (F,B,2Cout) f32."""
    f_total, batch, cin = xr.shape
    cout = wr.shape[-1]
    in_itemsize = jnp.dtype(xr.dtype).itemsize

    budget, vmem_limit = _vmem_sizing(vmem_budget_bytes)
    tf = _choose_block_freqs(f_total, batch, cin, cout, in_itemsize, budget)
    # Keep >= 2 grid steps so the "parallel" frequency axis can shard across the
    # two TensorCores on v7x (free on single-TC v5e/v6e).
    if f_total >= 2:
        tf = min(tf, pl.cdiv(f_total, 2))
    nsteps = pl.cdiv(f_total, tf)            # partial last block allowed; no pad

    kernel = functools.partial(
        _banded_block_kernel, tf=tf, total_f=f_total,
        needs_mask=(f_total % tf != 0), unroll=8)

    flops = 8 * f_total * batch * cin * cout
    bytes_accessed = (f_total * (2 * batch * cin + 2 * cin * cout) * in_itemsize
                      + f_total * 2 * cout * 4            # bias (read once)
                      + f_total * batch * 2 * cout * 4)   # packed f32 output

    return pl.pallas_call(
        kernel,
        grid=(nsteps,),
        in_specs=[
            pl.BlockSpec((tf, batch, cin), lambda f: (f, 0, 0)),
            pl.BlockSpec((tf, batch, cin), lambda f: (f, 0, 0)),
            pl.BlockSpec((tf, cin, cout), lambda f: (f, 0, 0)),
            pl.BlockSpec((tf, cin, cout), lambda f: (f, 0, 0)),
            # Bias: constant block index => DMA'd once, resident across steps.
            pl.BlockSpec((f_total, 1, 2 * cout), lambda f: (0, 0, 0)),
        ],
        out_specs=pl.BlockSpec((tf, batch, 2 * cout), lambda f: (f, 0, 0)),
        out_shape=jax.ShapeDtypeStruct((f_total, batch, 2 * cout), jnp.float32),
        compiler_params=pltpu.CompilerParams(
            dimension_semantics=("parallel",),
            vmem_limit_bytes=vmem_limit),
        cost_estimate=pl.CostEstimate(
            flops=flops, transcendentals=0, bytes_accessed=bytes_accessed),
    )(xr, xi, wr, wi, be)


# ----------------------------------------------------------------------------
# Full BandedFourierLayer forward (FFT glue in plain JAX)
# ----------------------------------------------------------------------------
def banded_fourier_layer_forward(x, wr, wi, br, bi, *, start, end, out_channels,
                                 compute_dtype=jnp.bfloat16,
                                 vmem_budget_bytes=None):
    """x: (B, T, Cin) float32.  Returns (B, T, Cout) float32."""
    b, t, _ = x.shape
    f_total = end - start
    cout = out_channels

    # TODO(synk): rfft/irfft have no Pallas TPU primitive; kept in plain JAX.
    x_fft = jnp.fft.rfft(x, axis=1)                           # (B, T//2+1, Cin) c64
    x_band = jnp.transpose(x_fft[:, start:end], (1, 0, 2))    # (F, B, Cin) freq-major

    # Dot operands in the (bf16) compute dtype: halves the mem-bound HBM streams
    # and feeds the bf16-native MXU.  Accumulation / bias / output stay f32.
    xr = jnp.real(x_band).astype(compute_dtype)
    xi = jnp.imag(x_band).astype(compute_dtype)
    wrc = wr.astype(compute_dtype)
    wic = wi.astype(compute_dtype)
    be = jnp.concatenate([br, bi], axis=-1).astype(jnp.float32)
    be = be.reshape(f_total, 1, 2 * cout)                      # (F, 1, 2Cout)

    y = _band_complex_matmul(xr, xi, wrc, wic, be,
                             vmem_budget_bytes=vmem_budget_bytes)  # (F, B, 2Cout)

    out_band = lax.complex(y[..., :cout], y[..., cout:])       # (F, B, Cout) c64
    out_band = jnp.transpose(out_band, (1, 0, 2))              # (B, F, Cout)
    out_fft = jnp.zeros((b, t // 2 + 1, cout), dtype=jnp.complex64)
    out_fft = out_fft.at[:, start:end].set(out_band)
    return jnp.fft.irfft(out_fft, n=t, axis=1)                 # (B, T, Cout)


# ----------------------------------------------------------------------------
# Deterministic parameter init (mirrors shapes of the PyTorch module)
# ----------------------------------------------------------------------------
def init_params(key, num_freqs, in_channels, out_channels):
    # kaiming_uniform_(a=sqrt(5)) on cfloat weight of shape (F, Cin, Cout)
    fan_in = in_channels * out_channels
    gain = math.sqrt(2.0 / (1.0 + 5.0))
    w_bound = gain * math.sqrt(3.0 / fan_in)
    b_bound = 1.0 / math.sqrt(fan_in)

    k1, k2, k3, k4 = jax.random.split(key, 4)
    wr = jax.random.uniform(k1, (num_freqs, in_channels, out_channels),
                            jnp.float32, -w_bound, w_bound)
    wi = jax.random.uniform(k2, (num_freqs, in_channels, out_channels),
                            jnp.float32, -w_bound, w_bound)
    br = jax.random.uniform(k3, (num_freqs, out_channels),
                            jnp.float32, -b_bound, b_bound)
    bi = jax.random.uniform(k4, (num_freqs, out_channels),
                            jnp.float32, -b_bound, b_bound)
    return wr, wi, br, bi


# ----------------------------------------------------------------------------
# Pure-JAX reference for correctness checking
# ----------------------------------------------------------------------------
def reference_forward(x, wr, wi, br, bi, *, start, end, out_channels):
    b, t, _ = x.shape
    x_fft = jnp.fft.rfft(x, axis=1)
    w = (wr + 1j * wi).astype(jnp.complex64)
    bias = (br + 1j * bi).astype(jnp.complex64)
    band = jnp.einsum('bti,tio->bto', x_fft[:, start:end], w) + bias
    out_fft = jnp.zeros((b, t // 2 + 1, out_channels), dtype=jnp.complex64)
    out_fft = out_fft.at[:, start:end].set(band)
    return jnp.fft.irfft(out_fft, n=t, axis=1)


# ----------------------------------------------------------------------------
# Test driver
# ----------------------------------------------------------------------------
def _run_case(*, seq_len, num_bands, band, compute_dtype, atol, rtol, key,
              batch=2, in_channels=8, out_channels=8):
    total_freqs = seq_len // 2 + 1
    num_freqs = total_freqs // num_bands + (
        total_freqs % num_bands if band == num_bands - 1 else 0)
    start = band * (total_freqs // num_bands)
    end = start + num_freqs

    k_x, k_p = jax.random.split(key)
    x = jax.random.normal(k_x, (batch, seq_len, in_channels), dtype=jnp.float32)
    wr, wi, br, bi = init_params(k_p, num_freqs, in_channels, out_channels)

    fwd = functools.partial(banded_fourier_layer_forward, start=start, end=end,
                            out_channels=out_channels, compute_dtype=compute_dtype)
    out = jax.block_until_ready(jax.jit(fwd)(x, wr, wi, br, bi))
    ref = reference_forward(x, wr, wi, br, bi,
                            start=start, end=end, out_channels=out_channels)
    assert out.shape == (batch, seq_len, out_channels)
    assert bool(jnp.allclose(out, ref, atol=atol, rtol=rtol)), (
        f"mismatch vs reference: seq_len={seq_len} band={band}/{num_bands} "
        f"dtype={jnp.dtype(compute_dtype).name} "
        f"max_err={float(jnp.max(jnp.abs(out - ref)))}")


if __name__ == "__main__":
    key = jax.random.PRNGKey(0)
    cases = [
        # F=4  -> tf=2: divisible grid, static unroll (strict f32 check).
        dict(seq_len=16, num_bands=2, band=0, compute_dtype=jnp.float32,
             atol=2e-4, rtol=2e-4),
        # F=5  -> tf=3: partial last block + tail mask, static unroll.
        dict(seq_len=16, num_bands=2, band=1, compute_dtype=jnp.float32,
             atol=2e-4, rtol=2e-4),
        # F=65 -> tf=33 (>8): fori_loop body + tail mask (strict f32 check).
        dict(seq_len=128, num_bands=1, band=0, compute_dtype=jnp.float32,
             atol=2e-4, rtol=2e-4),
        # bf16 compute paths (loose tolerance: bf16 spectrum/weight rounding).
        dict(seq_len=16, num_bands=2, band=1, compute_dtype=jnp.bfloat16,
             atol=1e-1, rtol=1e-1),
        dict(seq_len=128, num_bands=1, band=0, compute_dtype=jnp.bfloat16,
             atol=1e-1, rtol=1e-1),
    ]
    for i, case in enumerate(cases):
        _run_case(key=jax.random.fold_in(key, i), **case)
    print("KERNEL_OK")
</pallas_src>

<mosaic_0001>
module attributes {stable_mosaic.version = 11 : i64} {
  func.func @_banded_block_kernel(%arg0: i32, %arg1: memref<2x2x8xf32, #tpu.memory_space<vmem>>, %arg2: memref<2x2x8xf32, #tpu.memory_space<vmem>>, %arg3: memref<2x8x8xf32, #tpu.memory_space<vmem>>, %arg4: memref<2x8x8xf32, #tpu.memory_space<vmem>>, %arg5: memref<4x1x16xf32, #tpu.memory_space<vmem>>, %arg6: memref<2x2x16xf32, #tpu.memory_space<vmem>>) attributes {dimension_semantics = [#tpu.dimension_semantics<parallel>], iteration_bounds = array<i64: 2>, scalar_prefetch = 0 : i64, scratch_operands = 0 : i64, tpu.core_type = #tpu.core_type<tc>, window_params = [{transform_indices = @transform_0, window_bounds = array<i64: 2, 2, 8>}, {transform_indices = @transform_1, window_bounds = array<i64: 2, 2, 8>}, {transform_indices = @transform_2, window_bounds = array<i64: 2, 8, 8>}, {transform_indices = @transform_3, window_bounds = array<i64: 2, 8, 8>}, {pipeline_mode = #tpu.pipeline_mode<synchronous>, transform_indices = @transform_4, window_bounds = array<i64: 4, 1, 16>}, {transform_indices = @transform_5, window_bounds = array<i64: 2, 2, 16>}]} {
    %c2_i32 = arith.constant 2 : i32
    %0 = arith.muli %arg0, %c2_i32 : i32
    %c0 = arith.constant 0 : index
    %c0_0 = arith.constant 0 : index
    %c0_1 = arith.constant 0 : index
    %1 = vector.load %arg1[%c0, %c0_0, %c0_1] : memref<2x2x8xf32, #tpu.memory_space<vmem>>, vector<1x2x8xf32>
    %2 = vector.shape_cast %1 : vector<1x2x8xf32> to vector<2x8xf32>
    %c0_2 = arith.constant 0 : index
    %c0_3 = arith.constant 0 : index
    %c0_4 = arith.constant 0 : index
    %3 = vector.load %arg2[%c0_2, %c0_3, %c0_4] : memref<2x2x8xf32, #tpu.memory_space<vmem>>, vector<1x2x8xf32>
    %4 = vector.shape_cast %3 : vector<1x2x8xf32> to vector<2x8xf32>
    %c0_5 = arith.constant 0 : index
    %c0_6 = arith.constant 0 : index
    %c0_7 = arith.constant 0 : index
    %5 = vector.load %arg3[%c0_5, %c0_6, %c0_7] : memref<2x8x8xf32, #tpu.memory_space<vmem>>, vector<1x8x8xf32>
    %6 = vector.shape_cast %5 : vector<1x8x8xf32> to vector<8x8xf32>
    %c0_8 = arith.constant 0 : index
    %c0_9 = arith.constant 0 : index
    %c0_10 = arith.constant 0 : index
    %7 = vector.load %arg4[%c0_8, %c0_9, %c0_10] : memref<2x8x8xf32, #tpu.memory_space<vmem>>, vector<1x8x8xf32>
    %8 = vector.shape_cast %7 : vector<1x8x8xf32> to vector<8x8xf32>
    %cst = arith.constant dense<0.000000e+00> : vector<2x8xf32>
    %9 = tpu.matmul %2, %6, %cst {dimension_numbers = #tpu.dot_dimension_numbers<[1], [0], [0], [1], [0, 0, 1, 1], [], []>} : vector<2x8xf32>, vector<8x8xf32>, vector<2x8xf32> -> vector<2x8xf32>
    %cst_11 = arith.constant dense<0.000000e+00> : vector<2x8xf32>
    %10 = tpu.matmul %4, %8, %cst_11 {dimension_numbers = #tpu.dot_dimension_numbers<[1], [0], [0], [1], [0, 0, 1, 1], [], []>} : vector<2x8xf32>, vector<8x8xf32>, vector<2x8xf32> -> vector<2x8xf32>
    %11 = arith.subf %9, %10 : vector<2x8xf32>
    %cst_12 = arith.constant dense<0.000000e+00> : vector<2x8xf32>
    %12 = tpu.matmul %2, %8, %cst_12 {dimension_numbers = #tpu.dot_dimension_numbers<[1], [0], [0], [1], [0, 0, 1, 1], [], []>} : vector<2x8xf32>, vector<8x8xf32>, vector<2x8xf32> -> vector<2x8xf32>
    %cst_13 = arith.constant dense<0.000000e+00> : vector<2x8xf32>
    %13 = tpu.matmul %4, %6, %cst_13 {dimension_numbers = #tpu.dot_dimension_numbers<[1], [0], [0], [1], [0, 0, 1, 1], [], []>} : vector<2x8xf32>, vector<8x8xf32>, vector<2x8xf32> -> vector<2x8xf32>
    %14 = arith.addf %12, %13 : vector<2x8xf32>
    %15 = tpu.concatenate %11, %14 in 1 : vector<2x8xf32>, vector<2x8xf32> -> vector<2x16xf32>
    %c0_i32 = arith.constant 0 : i32
    %16 = arith.addi %0, %c0_i32 : i32
    %17 = arith.index_cast %16 : i32 to index
    %c0_14 = arith.constant 0 : index
    %c0_15 = arith.constant 0 : index
    %18 = vector.load %arg5[%17, %c0_14, %c0_15] : memref<4x1x16xf32, #tpu.memory_space<vmem>>, vector<1x1x16xf32>
    %19 = vector.shape_cast %18 : vector<1x1x16xf32> to vector<1x16xf32>
    %20 = vector.broadcast %19 : vector<1x16xf32> to vector<2x16xf32>
    %21 = arith.addf %15, %20 : vector<2x16xf32>
    %c0_16 = arith.constant 0 : index
    %c0_17 = arith.constant 0 : index
    %c0_18 = arith.constant 0 : index
    %22 = vector.load %arg6[%c0_16, %c0_17, %c0_18] : memref<2x2x16xf32, #tpu.memory_space<vmem>>, vector<1x2x16xf32>
    %23 = vector.shape_cast %22 : vector<1x2x16xf32> to vector<2x16xf32>
    %24 = vector.shape_cast %21 : vector<2x16xf32> to vector<1x2x16xf32>
    tpu.vector_store %arg6[%c0_16, %c0_17, %c0_18], %24 {strides = array<i32>} : memref<2x2x16xf32, #tpu.memory_space<vmem>>, vector<1x2x16xf32>,
    %c1 = arith.constant 1 : index
    %c0_19 = arith.constant 0 : index
    %c0_20 = arith.constant 0 : index
    %25 = vector.load %arg1[%c1, %c0_19, %c0_20] : memref<2x2x8xf32, #tpu.memory_space<vmem>>, vector<1x2x8xf32>
    %26 = vector.shape_cast %25 : vector<1x2x8xf32> to vector<2x8xf32>
    %c1_21 = arith.constant 1 : index
    %c0_22 = arith.constant 0 : index
    %c0_23 = arith.constant 0 : index
    %27 = vector.load %arg2[%c1_21, %c0_22, %c0_23] : memref<2x2x8xf32, #tpu.memory_space<vmem>>, vector<1x2x8xf32>
    %28 = vector.shape_cast %27 : vector<1x2x8xf32> to vector<2x8xf32>
    %c1_24 = arith.constant 1 : index
    %c0_25 = arith.constant 0 : index
    %c0_26 = arith.constant 0 : index
    %29 = vector.load %arg3[%c1_24, %c0_25, %c0_26] : memref<2x8x8xf32, #tpu.memory_space<vmem>>, vector<1x8x8xf32>
    %30 = vector.shape_cast %29 : vector<1x8x8xf32> to vector<8x8xf32>
    %c1_27 = arith.constant 1 : index
    %c0_28 = arith.constant 0 : index
    %c0_29 = arith.constant 0 : index
    %31 = vector.load %arg4[%c1_27, %c0_28, %c0_29] : memref<2x8x8xf32, #tpu.memory_space<vmem>>, vector<1x8x8xf32>
    %32 = vector.shape_cast %31 : vector<1x8x8xf32> to vector<8x8xf32>
    %cst_30 = arith.constant dense<0.000000e+00> : vector<2x8xf32>
    %33 = tpu.matmul %26, %30, %cst_30 {dimension_numbers = #tpu.dot_dimension_numbers<[1], [0], [0], [1], [0, 0, 1, 1], [], []>} : vector<2x8xf32>, vector<8x8xf32>, vector<2x8xf32> -> vector<2x8xf32>
    %cst_31 = arith.constant dense<0.000000e+00> : vector<2x8xf32>
    %34 = tpu.matmul %28, %32, %cst_31 {dimension_numbers = #tpu.dot_dimension_numbers<[1], [0], [0], [1], [0, 0, 1, 1], [], []>} : vector<2x8xf32>, vector<8x8xf32>, vector<2x8xf32> -> vector<2x8xf32>
    %35 = arith.subf %33, %34 : vector<2x8xf32>
    %cst_32 = arith.constant dense<0.000000e+00> : vector<2x8xf32>
    %36 = tpu.matmul %26, %32, %cst_32 {dimension_numbers = #tpu.dot_dimension_numbers<[1], [0], [0], [1], [0, 0, 1, 1], [], []>} : vector<2x8xf32>, vector<8x8xf32>, vector<2x8xf32> -> vector<2x8xf32>
    %cst_33 = arith.constant dense<0.000000e+00> : vector<2x8xf32>
    %37 = tpu.matmul %28, %30, %cst_33 {dimension_numbers = #tpu.dot_dimension_numbers<[1], [0], [0], [1], [0, 0, 1, 1], [], []>} : vector<2x8xf32>, vector<8x8xf32>, vector<2x8xf32> -> vector<2x8xf32>
    %38 = arith.addf %36, %37 : vector<2x8xf32>
    %39 = tpu.concatenate %35, %38 in 1 : vector<2x8xf32>, vector<2x8xf32> -> vector<2x16xf32>
    %c1_i32 = arith.constant 1 : i32
    %40 = arith.addi %0, %c1_i32 : i32
    %41 = arith.index_cast %40 : i32 to index
    %c0_34 = arith.constant 0 : index
    %c0_35 = arith.constant 0 : index
    %42 = vector.load %arg5[%41, %c0_34, %c0_35] : memref<4x1x16xf32, #tpu.memory_space<vmem>>, vector<1x1x16xf32>
    %43 = vector.shape_cast %42 : vector<1x1x16xf32> to vector<1x16xf32>
    %44 = vector.broadcast %43 : vector<1x16xf32> to vector<2x16xf32>
    %45 = arith.addf %39, %44 : vector<2x16xf32>
    %c1_36 = arith.constant 1 : index
    %c0_37 = arith.constant 0 : index
    %c0_38 = arith.constant 0 : index
    %46 = vector.load %arg6[%c1_36, %c0_37, %c0_38] : memref<2x2x16xf32, #tpu.memory_space<vmem>>, vector<1x2x16xf32>
    %47 = vector.shape_cast %46 : vector<1x2x16xf32> to vector<2x16xf32>
    %48 = vector.shape_cast %45 : vector<2x16xf32> to vector<1x2x16xf32>
    tpu.vector_store %arg6[%c1_36, %c0_37, %c0_38], %48 {strides = array<i32>} : memref<2x2x16xf32, #tpu.memory_space<vmem>>, vector<1x2x16xf32>,
    return
  }
  func.func @transform_0(%arg0: i32) -> (i32, i32, i32) {
    %c0_i32 = arith.constant 0 : i32
    %c0_i32_0 = arith.constant 0 : i32
    %c0_i32_1 = arith.constant 0 : i32
    return %arg0, %c0_i32, %c0_i32_0 : i32, i32, i32
  }
  func.func @transform_1(%arg0: i32) -> (i32, i32, i32) {
    %c0_i32 = arith.constant 0 : i32
    %c0_i32_0 = arith.constant 0 : i32
    %c0_i32_1 = arith.constant 0 : i32
    return %arg0, %c0_i32, %c0_i32_0 : i32, i32, i32
  }
  func.func @transform_2(%arg0: i32) -> (i32, i32, i32) {
    %c0_i32 = arith.constant 0 : i32
    %c0_i32_0 = arith.constant 0 : i32
    %c0_i32_1 = arith.constant 0 : i32
    return %arg0, %c0_i32, %c0_i32_0 : i32, i32, i32
  }
  func.func @transform_3(%arg0: i32) -> (i32, i32, i32) {
    %c0_i32 = arith.constant 0 : i32
    %c0_i32_0 = arith.constant 0 : i32
    %c0_i32_1 = arith.constant 0 : i32
    return %arg0, %c0_i32, %c0_i32_0 : i32, i32, i32
  }
  func.func @transform_4(%arg0: i32) -> (i32, i32, i32) {
    %c0_i32 = arith.constant 0 : i32
    %c0_i32_0 = arith.constant 0 : i32
    %c0_i32_1 = arith.constant 0 : i32
    %c0_i32_2 = arith.constant 0 : i32
    return %c0_i32, %c0_i32_0, %c0_i32_1 : i32, i32, i32
  }
  func.func @transform_5(%arg0: i32) -> (i32, i32, i32) {
    %c0_i32 = arith.constant 0 : i32
    %c0_i32_0 = arith.constant 0 : i32
    %c0_i32_1 = arith.constant 0 : i32
    return %arg0, %c0_i32, %c0_i32_0 : i32, i32, i32
  }
}

</mosaic_0001>

<llo_original>
// kernel: reverse.1
$region0: #{reverse.1}
  #allocation0 [shape = 's32[1]{0}', space=sflag, size = 0x4, scoped, tag = 'scoped memory for reverse.1']
  %s0 = inlined_call_operand.vmem [shape: f32[2,8,7], index: 0, kind: input, shape index: {}]
  %s1 = inlined_call_operand.vmem [shape: f32[2,8,7], index: 1, kind: output, shape index: {}]
  %s2 = scalar_lea.vmem %s0, 12
  %v3 = vld [vmem:[%s2] sm:$0x3]
  %4 = vst [vmem:[%s1] sm:$0x3] %v3
  %s5 = scalar_lea.vmem %s0, 10
  %v6 = vld [vmem:[%s5] sm:$0x3]
  %s7 = scalar_lea.vmem %s1, 2
  %8 = vst [vmem:[%s7] sm:$0x3] %v6
  %s9 = scalar_lea.vmem %s0, 8
  %v10 = vld [vmem:[%s9] sm:$0x3]
  %s11 = scalar_lea.vmem %s1, 4
  %12 = vst [vmem:[%s11] sm:$0x3] %v10
  %s13 = scalar_lea.vmem %s0, 6
  %v14 = vld [vmem:[%s13] sm:$0x3]
  %s15 = scalar_lea.vmem %s1, 6
  %16 = vst [vmem:[%s15] sm:$0x3] %v14
  %s17 = scalar_lea.vmem %s0, 4
  %v18 = vld [vmem:[%s17] sm:$0x3]
  %s19 = scalar_lea.vmem %s1, 8
  %20 = vst [vmem:[%s19] sm:$0x3] %v18
  %s21 = scalar_lea.vmem %s0, 2
  %v22 = vld [vmem:[%s21] sm:$0x3]
  %s23 = scalar_lea.vmem %s1, 10
  %24 = vst [vmem:[%s23] sm:$0x3] %v22
  %v25 = vld [vmem:[%s0] sm:$0x3]
  %s26 = scalar_lea.vmem %s1, 12
  %27 = vst [vmem:[%s26] sm:$0x3] %v25

// kernel: banded_fourier_layer_forward.1
$region0: #{banded_fourier_layer_forward.1}
  #allocation0 [shape = 'u32[]', space=smem, size = 0x4, offset = 0x4, fixed_abs, tag = 'smem constant byte address 0x4 - core index']
  #allocation1 [shape = 'u32[72,128]{1,0:T(1,128)}', space=vmem, size = 0x9000, scoped, tag = 'internal scratch']
  %s0 = inlined_call_operand.vmem [shape: f32[4,2,8], index: 0, kind: input, shape index: {}]
  %s1 = inlined_call_operand.vmem [shape: f32[4,2,8], index: 1, kind: input, shape index: {}]
  %s2 = inlined_call_operand.vmem [shape: f32[4,8,8], index: 2, kind: input, shape index: {}]
  %s3 = inlined_call_operand.vmem [shape: f32[4,8,8], index: 3, kind: input, shape index: {}]
  %s4 = inlined_call_operand.vmem [shape: f32[4,1,16], index: 4, kind: input, shape index: {}]
  %s5 = inlined_call_operand.vmem [shape: f32[4,2,16], index: 5, kind: output, shape index: {}]
  %s6 = sld [smem:[#allocation0]]
  $region53: #{banded_fourier_layer_forward.1} parent=0
    _
  %s8 = ssub.s32 1, %s6
  %s9 = scalar_select 0, %s8, %s6
  loop: start=0, step=1, limit=4
  $region2: #{banded_fourier_layer_forward.1} parent=0 // loop_pre_header
    _
  $region3: #{banded_fourier_layer_forward.1} parent=0 // loop_header
    %s11 = sphi 0, %s15
    %p12 = scmp.ge.s32.totalorder %s11, 4
    %s21 = sphi 0, %s23
    %s24 = sphi 0, %s21
    %s25 = sphi 0, %s24
    %s41 = sphi 0, %s25
    %s47 = sphi 0, %s49
    %s50 = sphi 0, %s47
    %s51 = sphi 0, %s50
    %s67 = sphi 0, %s51
    %s73 = sphi 0, %s75
    %s76 = sphi 0, %s73
    %s77 = sphi 0, %s76
    %s93 = sphi 0, %s77
    %s99 = sphi 0, %s101
    %s102 = sphi 0, %s99
    %s103 = sphi 0, %s102
    %s119 = sphi 0, %s103
    %s123 = sphi 0, %s123
    %s125 = sphi 0, %s123
    %s126 = sphi 0, %s125
    %s140 = sphi 0, %s126
    %s146 = sphi 0, %s148
    %s149 = sphi 0, %s146
    %s150 = sphi 0, %s149
    %s166 = sphi 0, %s150
  $region4: #{banded_fourier_layer_forward.1} parent=0 // loop_header_branch
    %14 = sbr.rel (%p12) target = $region8
  $region5: #{banded_fourier_layer_forward.1} parent=0 // loop_body
    %s16 = ssub.s32 %s11, 1
    %s17 = ssub.s32 %s11, 2
    %s18 = sadd.s32 %s11, 1
    %s19 = ssub.s32 %s11, %s18
    %p20 = scmp.eq.s32.totalorder %s19, 0
    %s22 = sadd.s32 %s21, 1
    %s23 = scalar_select %p20, %s21, %s22
    %p26 = pneg %p20
    %p27 = scmp.eq.s32.totalorder %s11, 1
    %p28 = por %p26, %p27
    %p29 = scmp.ne.s32.totalorder %s21, %s24
    %p30 = scmp.eq.s32.totalorder %s11, 0
    %p31 = por %p29, %p30
    %p32 = scmp.ne.s32.totalorder %s21, %s24
    %p33 = scmp.eq.s32.totalorder %s16, 1
    %p34 = por %p32, %p33
    %p35 = scmp.ne.s32.totalorder %s24, %s25
    %p36 = scmp.eq.s32.totalorder %s16, 0
    %p37 = por %p35, %p36
    %p38 = scmp.ne.s32.totalorder %s24, %s25
    %p39 = scmp.eq.s32.totalorder %s17, 1
    %p40 = por %p38, %p39
    %p42 = scmp.ne.s32.totalorder %s25, %s41
    %p43 = scmp.eq.s32.totalorder %s17, 0
    %p44 = por %p42, %p43
    %s45 = ssub.s32 %s11, %s18
    %p46 = scmp.eq.s32.totalorder %s45, 0
    %s48 = sadd.s32 %s47, 1
    %s49 = scalar_select %p46, %s47, %s48
    %p52 = pneg %p46
    %p53 = scmp.eq.s32.totalorder %s11, 1
    %p54 = por %p52, %p53
    %p55 = scmp.ne.s32.totalorder %s47, %s50
    %p56 = scmp.eq.s32.totalorder %s11, 0
    %p57 = por %p55, %p56
    %p58 = scmp.ne.s32.totalorder %s47, %s50
    %p59 = scmp.eq.s32.totalorder %s16, 1
    %p60 = por %p58, %p59
    %p61 = scmp.ne.s32.totalorder %s50, %s51
    %p62 = scmp.eq.s32.totalorder %s16, 0
    %p63 = por %p61, %p62
    %p64 = scmp.ne.s32.totalorder %s50, %s51
    %p65 = scmp.eq.s32.totalorder %s17, 1
    %p66 = por %p64, %p65
    %p68 = scmp.ne.s32.totalorder %s51, %s67
    %p69 = scmp.eq.s32.totalorder %s17, 0
    %p70 = por %p68, %p69
    %s71 = ssub.s32 %s11, %s18
    %p72 = scmp.eq.s32.totalorder %s71, 0
    %s74 = sadd.s32 %s73, 1
    %s75 = scalar_select %p72, %s73, %s74
    %p78 = pneg %p72
    %p79 = scmp.eq.s32.totalorder %s11, 1
    %p80 = por %p78, %p79
    %p81 = scmp.ne.s32.totalorder %s73, %s76
    %p82 = scmp.eq.s32.totalorder %s11, 0
    %p83 = por %p81, %p82
    %p84 = scmp.ne.s32.totalorder %s73, %s76
    %p85 = scmp.eq.s32.totalorder %s16, 1
    %p86 = por %p84, %p85
    %p87 = scmp.ne.s32.totalorder %s76, %s77
    %p88 = scmp.eq.s32.totalorder %s16, 0
    %p89 = por %p87, %p88
    %p90 = scmp.ne.s32.totalorder %s76, %s77
    %p91 = scmp.eq.s32.totalorder %s17, 1
    %p92 = por %p90, %p91
    %p94 = scmp.ne.s32.totalorder %s77, %s93
    %p95 = scmp.eq.s32.totalorder %s17, 0
    %p96 = por %p94, %p95
    %s97 = ssub.s32 %s11, %s18
    %p98 = scmp.eq.s32.totalorder %s97, 0
    %s100 = sadd.s32 %s99, 1
    %s101 = scalar_select %p98, %s99, %s100
    %p104 = pneg %p98
    %p105 = scmp.eq.s32.totalorder %s11, 1
    %p106 = por %p104, %p105
    %p107 = scmp.ne.s32.totalorder %s99, %s102
    %p108 = scmp.eq.s32.totalorder %s11, 0
    %p109 = por %p107, %p108
    %p110 = scmp.ne.s32.totalorder %s99, %s102
    %p111 = scmp.eq.s32.totalorder %s16, 1
    %p112 = por %p110, %p111
    %p113 = scmp.ne.s32.totalorder %s102, %s103
    %p114 = scmp.eq.s32.totalorder %s16, 0
    %p115 = por %p113, %p114
    %p116 = scmp.ne.s32.totalorder %s102, %s103
    %p117 = scmp.eq.s32.totalorder %s17, 1
    %p118 = por %p116, %p117
    %p120 = scmp.ne.s32.totalorder %s103, %s119
    %p121 = scmp.eq.s32.totalorder %s17, 0
    %p122 = por %p120, %p121
    %s124 = sadd.s32 %s123, 1
    %p127 = scmp.eq.s32.totalorder %s11, 1
    %p128 = scmp.ne.s32.totalorder %s123, %s125
    %p129 = scmp.eq.s32.totalorder %s11, 0
    %p130 = por %p128, %p129
    %p131 = scmp.ne.s32.totalorder %s123, %s125
    %p132 = scmp.eq.s32.totalorder %s16, 1
    %p133 = por %p131, %p132
    %p134 = scmp.ne.s32.totalorder %s125, %s126
    %p135 = scmp.eq.s32.totalorder %s16, 0
    %p136 = por %p134, %p135
    %p137 = scmp.ne.s32.totalorder %s125, %s126
    %p138 = scmp.eq.s32.totalorder %s17, 1
    %p139 = por %p137, %p138
    %p141 = scmp.ne.s32.totalorder %s126, %s140
    %p142 = scmp.eq.s32.totalorder %s17, 0
    %p143 = por %p141, %p142
    %s144 = ssub.s32 %s11, %s18
    %p145 = scmp.eq.s32.totalorder %s144, 0
    %s147 = sadd.s32 %s146, 1
    %s148 = scalar_select %p145, %s146, %s147
    %p151 = pneg %p145
    %p152 = scmp.eq.s32.totalorder %s11, 1
    %p153 = por %p151, %p152
    %p154 = scmp.ne.s32.totalorder %s146, %s149
    %p155 = scmp.eq.s32.totalorder %s11, 0
    %p156 = por %p154, %p155
    %p157 = scmp.ne.s32.totalorder %s146, %s149
    %p158 = scmp.eq.s32.totalorder %s16, 1
    %p159 = por %p157, %p158
    %p160 = scmp.ne.s32.totalorder %s149, %s150
    %p161 = scmp.eq.s32.totalorder %s16, 0
    %p162 = por %p160, %p161
    %p163 = scmp.ne.s32.totalorder %s149, %s150
    %p164 = scmp.eq.s32.totalorder %s17, 1
    %p165 = por %p163, %p164
    %p167 = scmp.ne.s32.totalorder %s150, %s166
    %p168 = scmp.eq.s32.totalorder %s17, 0
    %p169 = por %p167, %p168
    %p170 = scmp.le.s32.totalorder 1, %s11
    %p171 = scmp.lt.s32.totalorder %s11, 3
    %p172 = pnand %p170, %p171
    %p173 = pneg %p172
    // Predicated region
    $region9: #{banded_fourier_layer_forward.1} parent=5 // pred_check
      _
    $region10: #{banded_fourier_layer_forward.1} parent=5 // pred_check_branch
      %175 = sbr.rel (%p172) target = $region12
    $region11: #{banded_fourier_layer_forward.1} parent=5 // pred_region
      %s176 = ssub.s32 %s11, 1
      // Predicated region
      $region13: #{banded_fourier_layer_forward.1} parent=11 // pred_check
        %p177 = pneg %p136
      $region14: #{banded_fourier_layer_forward.1} parent=11 // pred_check_branch
        %179 = sbr.rel (%p177) target = $region16
      $region15: #{banded_fourier_layer_forward.1} parent=11 // pred_region
        _
      $region16: #{banded_fourier_layer_forward.1} parent=11 // pred_fallthru
        _
    $region12: #{banded_fourier_layer_forward.1} parent=5 // pred_fallthru
      _
    %p180 = scmp.lt.s32.totalorder %s11, 2
    // Predicated region
    $region17: #{banded_fourier_layer_forward.1} parent=5 // pred_check
      %p181 = pneg %p180
    $region18: #{banded_fourier_layer_forward.1} parent=5 // pred_check_branch
      %183 = sbr.rel (%p181) target = $region20
    $region19: #{banded_fourier_layer_forward.1} parent=5 // pred_region
      // Predicated region
      $region21: #{banded_fourier_layer_forward.1} parent=19 // pred_check
        %p184 = pneg %p31
      $region22: #{banded_fourier_layer_forward.1} parent=19 // pred_check_branch
        %186 = sbr.rel (%p184) target = $region24
      $region23: #{banded_fourier_layer_forward.1} parent=19 // pred_region
        %s187 = smul.u32 2, %s11
        %p188 = scmp.lt.s32.totalorder %s187, 3
        %s189 = scalar_select %p188, %s187, 3
        %s190 = smul.addr %s189, 2
        %s191 = scalar_lea.vmem %s0, %s190
        %s192 = smul.u32 2, %s11
      $region24: #{banded_fourier_layer_forward.1} parent=19 // pred_fallthru
        _
      // Predicated region
      $region25: #{banded_fourier_layer_forward.1} parent=19 // pred_check
        %p193 = pneg %p57
      $region26: #{banded_fourier_layer_forward.1} parent=19 // pred_check_branch
        %195 = sbr.rel (%p193) target = $region28
      $region27: #{banded_fourier_layer_forward.1} parent=19 // pred_region
        %s196 = smul.u32 2, %s11
        %p197 = scmp.lt.s32.totalorder %s196, 3
        %s198 = scalar_select %p197, %s196, 3
        %s199 = smul.addr %s198, 2
        %s200 = scalar_lea.vmem %s1, %s199
        %s201 = smul.u32 2, %s11
      $region28: #{banded_fourier_layer_forward.1} parent=19 // pred_fallthru
        _
      // Predicated region
      $region29: #{banded_fourier_layer_forward.1} parent=19 // pred_check
        %p202 = pneg %p83
      $region30: #{banded_fourier_layer_forward.1} parent=19 // pred_check_branch
        %204 = sbr.rel (%p202) target = $region32
      $region31: #{banded_fourier_layer_forward.1} parent=19 // pred_region
        %s205 = smul.u32 2, %s11
        %p206 = scmp.lt.s32.totalorder %s205, 3
        %s207 = scalar_select %p206, %s205, 3
        %s208 = smul.addr %s207, 8
        %s209 = scalar_lea.vmem %s2, %s208
        %s210 = smul.u32 2, %s11
      $region32: #{banded_fourier_layer_forward.1} parent=19 // pred_fallthru
        _
      // Predicated region
      $region33: #{banded_fourier_layer_forward.1} parent=19 // pred_check
        %p211 = pneg %p109
      $region34: #{banded_fourier_layer_forward.1} parent=19 // pred_check_branch
        %213 = sbr.rel (%p211) target = $region36
      $region35: #{banded_fourier_layer_forward.1} parent=19 // pred_region
        %s214 = smul.u32 2, %s11
        %p215 = scmp.lt.s32.totalorder %s214, 3
        %s216 = scalar_select %p215, %s214, 3
        %s217 = smul.addr %s216, 8
        %s218 = scalar_lea.vmem %s3, %s217
        %s219 = smul.u32 2, %s11
      $region36: #{banded_fourier_layer_forward.1} parent=19 // pred_fallthru
        _
    $region20: #{banded_fourier_layer_forward.1} parent=5 // pred_fallthru
      _
    %p220 = scmp.le.s32.totalorder 1, %s11
    %p221 = scmp.lt.s32.totalorder %s11, 3
    %p222 = pnand %p220, %p221
    %p223 = pneg %p222
    // Predicated region
    $region37: #{banded_fourier_layer_forward.1} parent=5 // pred_check
      _
    $region38: #{banded_fourier_layer_forward.1} parent=5 // pred_check_branch
      %225 = sbr.rel (%p222) target = $region40
    $region39: #{banded_fourier_layer_forward.1} parent=5 // pred_region
      %s226 = ssub.s32 %s11, 1
      %s227 = smul.u32 2, %s16
      %p228 = scmp.lt.s32.totalorder %s227, 3
      %s229 = scalar_select %p228, %s227, 3
      %s230 = smul.addr %s229, 2
      %s231 = scalar_lea.vmem %s0, %s230
      %p232 = pneg %p37
      %p233 = pneg %p34
      %s234 = smul.u32 2, %s16
      %p235 = scmp.lt.s32.totalorder %s234, 3
      %s236 = scalar_select %p235, %s234, 3
      %s237 = smul.addr %s236, 2
      %s238 = scalar_lea.vmem %s1, %s237
      %p239 = pneg %p63
      %p240 = pneg %p60
      %s241 = smul.u32 2, %s16
      %p242 = scmp.lt.s32.totalorder %s241, 3
      %s243 = scalar_select %p242, %s241, 3
      %s244 = smul.addr %s243, 8
      %s245 = scalar_lea.vmem %s2, %s244
      %p246 = pneg %p89
      %p247 = pneg %p86
      %s248 = smul.u32 2, %s16
      %p249 = scmp.lt.s32.totalorder %s248, 3
      %s250 = scalar_select %p249, %s248, 3
      %s251 = smul.addr %s250, 8
      %s252 = scalar_lea.vmem %s3, %s251
      %p253 = pneg %p115
      %p254 = pneg %p112
      %p255 = pneg %p136
      %p256 = pneg %p133
      %p257 = pneg %p162
      %p258 = pneg %p159
      %s259 = smul.u32 2, %s16
      %p260 = scmp.lt.s32.totalorder %s259, 3
      %s261 = scalar_select %p260, %s259, 3
      %s262 = smul.addr %s261, 2
      %s263 = scalar_lea.vmem %s5, %s262
      %s264 = smul.u32 2, %s16
      %p265 = scmp.lt.s32.totalorder %s264, 3
      %s266 = scalar_select %p265, %s264, 3
      %s267 = smul.addr %s266, 2
      %s268 = scalar_lea.vmem %s0, %s267
      %s269 = smul.u32 2, %s16
      %s270 = smul.u32 2, %s16
      %p271 = scmp.lt.s32.totalorder %s270, 3
      %s272 = scalar_select %p271, %s270, 3
      %s273 = smul.addr %s272, 2
      %s274 = scalar_lea.vmem %s1, %s273
      %s275 = smul.u32 2, %s16
      %s276 = smul.u32 2, %s16
      %p277 = scmp.lt.s32.totalorder %s276, 3
      %s278 = scalar_select %p277, %s276, 3
      %s279 = smul.addr %s278, 8
      %s280 = scalar_lea.vmem %s2, %s279
      %s281 = smul.u32 2, %s16
      %s282 = smul.u32 2, %s16
      %p283 = scmp.lt.s32.totalorder %s282, 3
      %s284 = scalar_select %p283, %s282, 3
      %s285 = smul.addr %s284, 8
      %s286 = scalar_lea.vmem %s3, %s285
      %s287 = smul.u32 2, %s16
      %s288 = smul.u32 2, %s16
      %p289 = scmp.lt.s32.totalorder %s288, 3
      %s290 = scalar_select %p289, %s288, 3
      %s291 = smul.addr %s290, 2
      %s292 = scalar_lea.vmem %s5, %s291
      %s293 = smul.u32 2, %s16
      %s294 = smul.u32 %s16, 2
      %v295 = vld [vmem:[%s268] sm:$0x3]
      %v296 = vld [vmem:[%s274] sm:$0x3]
      %v297 = vld [vmem:[%s280] sm:$0xff]
      %v298 = vld [vmem:[%s286] sm:$0xff]
      %vm299 = vcmask 64512
      %v301 = vsel %vm299, %v295, 0
      %303 = vmatpush.msra.mxu0 0.0
      %304 = vmatpush.msra.mxu0 0.0
      %305 = vmatpush.msra.mxu0 0.0
      %306 = vmatpush.msra.mxu0 0.0
      %307 = vmatpush.msra.mxu0 0.0
      %308 = vmatpush.msra.mxu0 0.0
      %309 = vmatpush.msra.mxu0 0.0
      %310 = vmatpush.msra.mxu0 0.0
      %311 = vmatpush.msra.mxu0 0.0
      %312 = vmatpush.msra.mxu0 0.0
      %313 = vmatpush.msra.mxu0 0.0
      %314 = vmatpush.msra.mxu0 0.0
      %315 = vmatpush.msra.mxu0 0.0
      %316 = vmatpush.msra.mxu0 0.0
      %317 = vmatpush.msra.mxu0 0.0
      %318 = vmatpush.msra.mxu0 %v297
      %319 = vmatmul.f32.gmra.mxu0 %v301
      %v320 = vpop.f32.mrf.mxu0
      %v321 = vadd.f32 0.0, %v320
      %322 = vdwg.mxu0
      %v324 = vsel %vm299, %v296, 0
      %326 = vmatpush.msra.mxu0 0.0
      %327 = vmatpush.msra.mxu0 0.0
      %328 = vmatpush.msra.mxu0 0.0
      %329 = vmatpush.msra.mxu0 0.0
      %330 = vmatpush.msra.mxu0 0.0
      %331 = vmatpush.msra.mxu0 0.0
      %332 = vmatpush.msra.mxu0 0.0
      %333 = vmatpush.msra.mxu0 0.0
      %334 = vmatpush.msra.mxu0 0.0
      %335 = vmatpush.msra.mxu0 0.0
      %336 = vmatpush.msra.mxu0 0.0
      %337 = vmatpush.msra.mxu0 0.0
      %338 = vmatpush.msra.mxu0 0.0
      %339 = vmatpush.msra.mxu0 0.0
      %340 = vmatpush.msra.mxu0 0.0
      %341 = vmatpush.msra.mxu0 %v298
      %342 = vmatmul.f32.gmra.mxu0 %v324
      %v343 = vpop.f32.mrf.mxu0
      %v344 = vadd.f32 0.0, %v343
      %345 = vdwg.mxu0
      %v346 = vsub.f32 %v321, %v344
      %347 = vmatpush.msra.mxu0 0.0
      %348 = vmatpush.msra.mxu0 0.0
      %349 = vmatpush.msra.mxu0 0.0
      %350 = vmatpush.msra.mxu0 0.0
      %351 = vmatpush.msra.mxu0 0.0
      %352 = vmatpush.msra.mxu0 0.0
      %353 = vmatpush.msra.mxu0 0.0
      %354 = vmatpush.msra.mxu0 0.0
      %355 = vmatpush.msra.mxu0 0.0
      %356 = vmatpush.msra.mxu0 0.0
      %357 = vmatpush.msra.mxu0 0.0
      %358 = vmatpush.msra.mxu0 0.0
      %359 = vmatpush.msra.mxu0 0.0
      %360 = vmatpush.msra.mxu0 0.0
      %361 = vmatpush.msra.mxu0 0.0
      %362 = vmatpush.msra.mxu0 %v297
      %363 = vmatmul.f32.gmra.mxu0 %v324
      %v364 = vpop.f32.mrf.mxu0
      %v365 = vadd.f32 0.0, %v364
      %366 = vdwg.mxu0
      %367 = vmatpush.msra.mxu0 0.0
      %368 = vmatpush.msra.mxu0 0.0
      %369 = vmatpush.msra.mxu0 0.0
      %370 = vmatpush.msra.mxu0 0.0
      %371 = vmatpush.msra.mxu0 0.0
      %372 = vmatpush.msra.mxu0 0.0
      %373 = vmatpush.msra.mxu0 0.0
      %374 = vmatpush.msra.mxu0 0.0
      %375 = vmatpush.msra.mxu0 0.0
      %376 = vmatpush.msra.mxu0 0.0
      %377 = vmatpush.msra.mxu0 0.0
      %378 = vmatpush.msra.mxu0 0.0
      %379 = vmatpush.msra.mxu0 0.0
      %380 = vmatpush.msra.mxu0 0.0
      %381 = vmatpush.msra.mxu0 0.0
      %382 = vmatpush.msra.mxu0 %v298
      %383 = vmatmul.f32.gmra.mxu0 %v301
      %v384 = vpop.f32.mrf.mxu0
      %v385 = vadd.f32 %v365, %v384
      %386 = vdwg.mxu0
      %388 = vrot.lane.b32.xlu0 %v385, 8
      %v389 = vpop.permute.xlu0 %388
      %v391 = vsel %vm299, %v346, %v389
      %s392 = scalar_lea.vmem %s4, %s294
      %v393 = vld [vmem:[%s392] sm:$0x1]
      %v395 = vperm.slane %v393, 0
      %v397 = vadd.f32 %v391, %v395
      %vm398 = vcmask 123904
      %399 = vst.msk [vmem:[%s292] sm:$0x3] %vm398, %v397
      %s400 = scalar_lea.vmem %s268, 2
      %v401 = vld [vmem:[%s400] sm:$0x3]
      %s402 = scalar_lea.vmem %s274, 2
      %v403 = vld [vmem:[%s402] sm:$0x3]
      %s404 = scalar_lea.vmem %s280, 8
      %v405 = vld [vmem:[%s404] sm:$0xff]
      %s406 = scalar_lea.vmem %s286, 8
      %v407 = vld [vmem:[%s406] sm:$0xff]
      %v409 = vsel %vm299, %v401, 0
      %411 = vmatpush.msra.mxu0 0.0
      %412 = vmatpush.msra.mxu0 0.0
      %413 = vmatpush.msra.mxu0 0.0
      %414 = vmatpush.msra.mxu0 0.0
      %415 = vmatpush.msra.mxu0 0.0
      %416 = vmatpush.msra.mxu0 0.0
      %417 = vmatpush.msra.mxu0 0.0
      %418 = vmatpush.msra.mxu0 0.0
      %419 = vmatpush.msra.mxu0 0.0
      %420 = vmatpush.msra.mxu0 0.0
      %421 = vmatpush.msra.mxu0 0.0
      %422 = vmatpush.msra.mxu0 0.0
      %423 = vmatpush.msra.mxu0 0.0
      %424 = vmatpush.msra.mxu0 0.0
      %425 = vmatpush.msra.mxu0 0.0
      %426 = vmatpush.msra.mxu0 %v405
      %427 = vmatmul.f32.gmra.mxu0 %v409
      %v428 = vpop.f32.mrf.mxu0
      %v429 = vadd.f32 0.0, %v428
      %430 = vdwg.mxu0
      %v432 = vsel %vm299, %v403, 0
      %434 = vmatpush.msra.mxu0 0.0
      %435 = vmatpush.msra.mxu0 0.0
      %436 = vmatpush.msra.mxu0 0.0
      %437 = vmatpush.msra.mxu0 0.0
      %438 = vmatpush.msra.mxu0 0.0
      %439 = vmatpush.msra.mxu0 0.0
      %440 = vmatpush.msra.mxu0 0.0
      %441 = vmatpush.msra.mxu0 0.0
      %442 = vmatpush.msra.mxu0 0.0
      %443 = vmatpush.msra.mxu0 0.0
      %444 = vmatpush.msra.mxu0 0.0
      %445 = vmatpush.msra.mxu0 0.0
      %446 = vmatpush.msra.mxu0 0.0
      %447 = vmatpush.msra.mxu0 0.0
      %448 = vmatpush.msra.mxu0 0.0
      %449 = vmatpush.msra.mxu0 %v407
      %450 = vmatmul.f32.gmra.mxu0 %v432
      %v451 = vpop.f32.mrf.mxu0
      %v452 = vadd.f32 0.0, %v451
      %453 = vdwg.mxu0
      %v454 = vsub.f32 %v429, %v452
      %455 = vmatpush.msra.mxu0 0.0
      %456 = vmatpush.msra.mxu0 0.0
      %457 = vmatpush.msra.mxu0 0.0
      %458 = vmatpush.msra.mxu0 0.0
      %459 = vmatpush.msra.mxu0 0.0
      %460 = vmatpush.msra.mxu0 0.0
      %461 = vmatpush.msra.mxu0 0.0
      %462 = vmatpush.msra.mxu0 0.0
      %463 = vmatpush.msra.mxu0 0.0
      %464 = vmatpush.msra.mxu0 0.0
      %465 = vmatpush.msra.mxu0 0.0
      %466 = vmatpush.msra.mxu0 0.0
      %467 = vmatpush.msra.mxu0 0.0
      %468 = vmatpush.msra.mxu0 0.0
      %469 = vmatpush.msra.mxu0 0.0
      %470 = vmatpush.msra.mxu0 %v405
      %471 = vmatmul.f32.gmra.mxu0 %v432
      %v472 = vpop.f32.mrf.mxu0
      %v473 = vadd.f32 0.0, %v472
      %474 = vdwg.mxu0
      %475 = vmatpush.msra.mxu0 0.0
      %476 = vmatpush.msra.mxu0 0.0
      %477 = vmatpush.msra.mxu0 0.0
      %478 = vmatpush.msra.mxu0 0.0
      %479 = vmatpush.msra.mxu0 0.0
      %480 = vmatpush.msra.mxu0 0.0
      %481 = vmatpush.msra.mxu0 0.0
      %482 = vmatpush.msra.mxu0 0.0
      %483 = vmatpush.msra.mxu0 0.0
      %484 = vmatpush.msra.mxu0 0.0
      %485 = vmatpush.msra.mxu0 0.0
      %486 = vmatpush.msra.mxu0 0.0
      %487 = vmatpush.msra.mxu0 0.0
      %488 = vmatpush.msra.mxu0 0.0
      %489 = vmatpush.msra.mxu0 0.0
      %490 = vmatpush.msra.mxu0 %v407
      %491 = vmatmul.f32.gmra.mxu0 %v409
      %v492 = vpop.f32.mrf.mxu0
      %v493 = vadd.f32 %v473, %v492
      %494 = vdwg.mxu0
      %496 = vrot.lane.b32.xlu0 %v493, 8
      %v497 = vpop.permute.xlu0 %496
      %v499 = vsel %vm299, %v454, %v497
      %s500 = sadd.s32 %s294, 1
      %s501 = scalar_lea.vmem %s4, %s500
      %v502 = vld [vmem:[%s501] sm:$0x1]
      %v504 = vperm.slane %v502, 0
      %v506 = vadd.f32 %v499, %v504
      %s507 = scalar_lea.vmem %s292, 2
      %508 = vst.msk [vmem:[%s507] sm:$0x3] %vm398, %v506
      %s509 = smul.u32 2, %s16
      %p510 = scmp.lt.s32.totalorder %s509, 3
      %s511 = scalar_select %p510, %s509, 3
      %s512 = smul.addr %s511, 2
      %s513 = scalar_lea.vmem %s5, %s512
      // Predicated region
      $region41: #{banded_fourier_layer_forward.1} parent=39 // pred_check
        %p514 = pneg %p159
      $region42: #{banded_fourier_layer_forward.1} parent=39 // pred_check_branch
        %516 = sbr.rel (%p514) target = $region44
      $region43: #{banded_fourier_layer_forward.1} parent=39 // pred_region
        %s517 = smul.u32 2, %s16
      $region44: #{banded_fourier_layer_forward.1} parent=39 // pred_fallthru
        _
    $region40: #{banded_fourier_layer_forward.1} parent=5 // pred_fallthru
      _
    %p518 = scmp.le.s32.totalorder 2, %s11
    // Predicated region
    $region45: #{banded_fourier_layer_forward.1} parent=5 // pred_check
      %p519 = pneg %p518
    $region46: #{banded_fourier_layer_forward.1} parent=5 // pred_check_branch
      %521 = sbr.rel (%p519) target = $region48
    $region47: #{banded_fourier_layer_forward.1} parent=5 // pred_region
      %s522 = ssub.s32 %s11, 2
      // Predicated region
      $region49: #{banded_fourier_layer_forward.1} parent=47 // pred_check
        %p523 = pneg %p165
      $region50: #{banded_fourier_layer_forward.1} parent=47 // pred_check_branch
        %525 = sbr.rel (%p523) target = $region52
      $region51: #{banded_fourier_layer_forward.1} parent=47 // pred_region
        %s526 = smul.u32 2, %s17
        %p527 = scmp.lt.s32.totalorder %s526, 3
        %s528 = scalar_select %p527, %s526, 3
        %s529 = smul.addr %s528, 2
        %s530 = scalar_lea.vmem %s5, %s529
      $region52: #{banded_fourier_layer_forward.1} parent=47 // pred_fallthru
        _
    $region48: #{banded_fourier_layer_forward.1} parent=5 // pred_fallthru
      _
  $region6: #{banded_fourier_layer_forward.1} parent=0 // loop_footer
    %s15 = sadd.s32 1, %s11
  $region7: #{banded_fourier_layer_forward.1} parent=0 // loop_footer_branch
    %10 = sbr.rel target = $region3
  $region8: #{banded_fourier_layer_forward.1} parent=0 // loop_exit
    _

</llo_original>
